<compile_context>
chip_gen: v6e
topology: v6e:2x2x1
jax: 0.10.0
libtpu: 0.0.40
codegen_flags: <defaults>
</compile_context>

<pallas_src>
import functools

import jax
import jax.numpy as jnp
from jax.experimental import pallas as pl
from jax.experimental.pallas import tpu as pltpu


def _round_up(x, m):
    return (x + m - 1) // m * m


def _vmem_cap_bytes():
    try:
        return int(pltpu.get_tpu_info().vmem_capacity_bytes)
    except Exception:
        return 64 << 20  # conservative fallback (v7x per-TC VMEM)


def _resident_kernel(x_ref, w_ref, b_ref, o_ref, *, compute_dtype):
    # x_ref: (tm, nf) input dtype ; w_ref: (nf, tw_p) compute dtype (resident)
    # b_ref: (1, tw_p) f32        ; o_ref: (tm, tw_p) out dtype
    x = x_ref[...].astype(compute_dtype)
    acc = jnp.dot(x, w_ref[...], preferred_element_type=jnp.float32)
    o_ref[...] = (acc + b_ref[...]).astype(o_ref.dtype)


def _ktiled_kernel(x_ref, w_ref, b_ref, o_ref, acc_ref, *, compute_dtype):
    # x_ref: (tm, tk) input dtype ; w_ref: (tk, tw_p) compute dtype K-strip
    # b_ref: (1, tw_p) f32        ; o_ref: (tm, tw_p) ; acc_ref: (tm, tw_p) f32
    k = pl.program_id(1)

    @pl.when(k == 0)
    def _():
        acc_ref[...] = jnp.zeros_like(acc_ref)

    acc_ref[...] += jnp.dot(x_ref[...].astype(compute_dtype), w_ref[...],
                            preferred_element_type=jnp.float32)

    @pl.when(k == pl.num_programs(1) - 1)
    def _():
        o_ref[...] = (acc_ref[...] + b_ref[...]).astype(o_ref.dtype)


def flatten_head_forward(x, weight, bias, *, tm=256, tk=1024,
                         compute_dtype=jnp.bfloat16,
                         resident_weight_budget=8 << 20):
    """FlattenHead forward.

    x:      (bs, n_vars, d_model, patch_num)
    weight: (target_window, nf)   -- torch nn.Linear weight layout
    bias:   (target_window,)
    returns (bs, n_vars, target_window) in x.dtype.
    Dropout with p=0 / eval is identity (not applied).
    Set compute_dtype=jnp.float32 for strict f32 parity with the torch module.
    """
    bs, n_vars, d_model, patch_num = x.shape
    nf = d_model * patch_num
    target_window = weight.shape[0]
    out_dtype = x.dtype

    x_itm = jnp.dtype(x.dtype).itemsize
    c_itm = jnp.dtype(compute_dtype).itemsize
    o_itm = jnp.dtype(out_dtype).itemsize

    m = bs * n_vars
    # Flatten(start_dim=-2): row-major merge of the last two dims -> free view.
    x2d = x.reshape(m, nf)

    # Lane-dense output width (no masked stores; full MXU columns). Zero pad is exact.
    tw_p = _round_up(target_window, 128)

    # --- M tiling: sublane granule 8; keep >=2 M steps so both v7x TCs get work.
    tm = max(8, _round_up(min(tm, _round_up(m, 8)), 8))
    if m > 8 and _round_up(m, 8) <= tm:
        tm = _round_up(-(-m // 2), 8)
    m_p = _round_up(m, tm)
    grid_m = m_p // tm

    # One-time parameter prep: pre-transpose to [K, N] so the inner dot is the
    # native MXU form (no per-tile XLU transpose); pad N to a 128-lane multiple.
    w_t = jnp.pad(weight.T, ((0, 0), (0, tw_p - target_window))).astype(compute_dtype)
    b_p = jnp.pad(bias.astype(jnp.float32),
                  (0, tw_p - target_window)).reshape(1, tw_p)

    resident = nf * tw_p * c_itm <= resident_weight_budget

    if resident:
        # --- Fast path: weight resident in VMEM, single dot over full K. ---
        x_p = x2d if m_p == m else jnp.pad(x2d, ((0, m_p - m), (0, 0)))
        grid = (grid_m,)
        in_specs = [
            pl.BlockSpec((tm, nf), lambda i: (i, 0)),      # x row strip, full K
            pl.BlockSpec((nf, tw_p), lambda i: (0, 0)),    # resident weight [K,N]
            pl.BlockSpec((1, tw_p), lambda i: (0, 0)),     # resident bias
        ]
        out_specs = pl.BlockSpec((tm, tw_p), lambda i: (i, 0))
        scratch_shapes = []
        kernel = functools.partial(_resident_kernel, compute_dtype=compute_dtype)
        dims = ("parallel",)
        flops = 2 * m_p * nf * tw_p
        vmem_bytes = (2 * tm * nf * x_itm            # x tile (double-buffered)
                      + 2 * nf * tw_p * c_itm        # weight (buffer pair)
                      + 2 * tm * tw_p * o_itm        # output tile
                      + 2 * tw_p * 4)                # bias
        bytes_accessed = (m_p * nf * x_itm + nf * tw_p * c_itm
                          + tw_p * 4 + m_p * tw_p * o_itm)
    else:
        # --- Fallback: K-tiled accumulation for very large nf * target_window. ---
        tk = max(128, _round_up(min(tk, _round_up(nf, 128)), 128))
        nf_p = _round_up(nf, tk)
        x_p = x2d
        if m_p != m or nf_p != nf:
            x_p = jnp.pad(x2d, ((0, m_p - m), (0, nf_p - nf)))
        if nf_p != nf:
            w_t = jnp.pad(w_t, ((0, nf_p - nf), (0, 0)))
        grid = (grid_m, nf_p // tk)
        in_specs = [
            pl.BlockSpec((tm, tk), lambda i, k: (i, k)),      # x tile
            pl.BlockSpec((tk, tw_p), lambda i, k: (k, 0)),    # weight K-strip [K,N]
            pl.BlockSpec((1, tw_p), lambda i, k: (0, 0)),     # bias (resident)
        ]
        out_specs = pl.BlockSpec((tm, tw_p), lambda i, k: (i, 0))
        scratch_shapes = [pltpu.VMEM((tm, tw_p), jnp.float32)]
        kernel = functools.partial(_ktiled_kernel, compute_dtype=compute_dtype)
        dims = ("parallel", "arbitrary")
        flops = 2 * m_p * nf_p * tw_p
        vmem_bytes = (2 * tm * tk * x_itm
                      + 2 * tk * tw_p * c_itm
                      + 2 * tm * tw_p * o_itm
                      + tm * tw_p * 4               # f32 accumulator
                      + 2 * tw_p * 4)
        # Weight strips are re-DMA'd once per M tile with this schedule.
        bytes_accessed = (m_p * nf_p * x_itm
                          + grid_m * nf_p * tw_p * c_itm
                          + tw_p * 4 + m_p * tw_p * o_itm)

    cost = pl.CostEstimate(flops=int(flops), transcendentals=0,
                           bytes_accessed=int(bytes_accessed))

    vmem_cap = _vmem_cap_bytes()
    vmem_limit = int(min(max(vmem_bytes + (2 << 20), 4 << 20),
                         vmem_cap * 3 // 4))

    out_p = pl.pallas_call(
        kernel,
        out_shape=jax.ShapeDtypeStruct((m_p, tw_p), out_dtype),
        grid_spec=pltpu.PrefetchScalarGridSpec(
            num_scalar_prefetch=0,
            grid=grid,
            in_specs=in_specs,
            out_specs=out_specs,
            scratch_shapes=scratch_shapes,
        ),
        compiler_params=pltpu.CompilerParams(
            dimension_semantics=dims,
            vmem_limit_bytes=vmem_limit),
        cost_estimate=cost,
    )(x_p, w_t, b_p)

    out = out_p[:m, :target_window]
    return out.reshape(bs, n_vars, target_window)


if __name__ == "__main__":
    # Small shapes consistent with the module (PatchTST head).
    bs, n_vars, d_model, patch_num = 2, 16, 16, 16
    nf = d_model * patch_num            # 256
    target_window = 96                  # padded to 128 lanes inside the kernel

    key = jax.random.PRNGKey(0)
    kx, kw, kb = jax.random.split(key, 3)

    x = jax.random.normal(kx, (bs, n_vars, d_model, patch_num), dtype=jnp.float32)
    # Deterministic synthetic Linear params (nn.Linear(nf, target_window) shapes).
    weight = jax.random.normal(kw, (target_window, nf), dtype=jnp.float32) * 0.02
    bias = jax.random.normal(kb, (target_window,), dtype=jnp.float32) * 0.02

    # Resident-weight fast path (weight fits VMEM; grid_M forced to 2 for v7x).
    out = flatten_head_forward(x, weight, bias)
    out = jax.block_until_ready(out)
    assert out.shape == (bs, n_vars, target_window)
    assert out.dtype == x.dtype

    # K-tiled fallback path, forced by a zero resident budget: grid = (2, 2).
    out_kt = flatten_head_forward(x, weight, bias, tm=16, tk=128,
                                  resident_weight_budget=0)
    out_kt = jax.block_until_ready(out_kt)
    assert out_kt.shape == (bs, n_vars, target_window)

    # Reference with matching math (bf16 compute, f32 accumulation) — dropout
    # with p=0 / eval is identity.
    xb = x.reshape(bs, n_vars, nf).astype(jnp.bfloat16)
    wb = weight.astype(jnp.bfloat16)
    ref = jax.lax.dot_general(
        xb, wb, dimension_numbers=(((2,), (1,)), ((), ())),
        preferred_element_type=jnp.float32) + bias
    ref = ref.astype(x.dtype)
    assert jnp.allclose(out, ref, atol=1e-3, rtol=1e-3)
    assert jnp.allclose(out_kt, ref, atol=1e-3, rtol=1e-3)

    # Loose sanity check vs full-f32 math.
    ref_f32 = x.reshape(bs, n_vars, nf) @ weight.T + bias
    assert jnp.allclose(out, ref_f32, atol=5e-2, rtol=5e-2)
    assert jnp.allclose(out_kt, ref_f32, atol=5e-2, rtol=5e-2)

    print("KERNEL_OK")
</pallas_src>

<mosaic_0001>
module attributes {stable_mosaic.version = 11 : i64} {
  func.func @_resident_kernel(%arg0: i32, %arg1: memref<16x256xf32, #tpu.memory_space<vmem>>, %arg2: memref<256x128xbf16, #tpu.memory_space<vmem>>, %arg3: memref<1x128xf32, #tpu.memory_space<vmem>>, %arg4: memref<16x128xf32, #tpu.memory_space<vmem>>) attributes {dimension_semantics = [#tpu.dimension_semantics<parallel>], iteration_bounds = array<i64: 2>, scalar_prefetch = 0 : i64, scratch_operands = 0 : i64, tpu.core_type = #tpu.core_type<tc>, window_params = [{transform_indices = @transform_0, window_bounds = array<i64: 16, 256>}, {pipeline_mode = #tpu.pipeline_mode<synchronous>, transform_indices = @transform_1, window_bounds = array<i64: 256, 128>}, {pipeline_mode = #tpu.pipeline_mode<synchronous>, transform_indices = @transform_2, window_bounds = array<i64: 1, 128>}, {transform_indices = @transform_3, window_bounds = array<i64: 16, 128>}]} {
    %c0 = arith.constant 0 : index
    %c0_0 = arith.constant 0 : index
    %0 = vector.load %arg1[%c0, %c0_0] : memref<16x256xf32, #tpu.memory_space<vmem>>, vector<16x256xf32>
    %1 = arith.truncf %0 : vector<16x256xf32> to vector<16x256xbf16>
    %c0_1 = arith.constant 0 : index
    %c0_2 = arith.constant 0 : index
    %2 = vector.load %arg2[%c0_1, %c0_2] : memref<256x128xbf16, #tpu.memory_space<vmem>>, vector<256x128xbf16>
    %cst = arith.constant dense<0.000000e+00> : vector<16x128xf32>
    %3 = tpu.matmul %1, %2, %cst {dimension_numbers = #tpu.dot_dimension_numbers<[1], [0], [0], [1], [0, 0, 1, 1], [], []>} : vector<16x256xbf16>, vector<256x128xbf16>, vector<16x128xf32> -> vector<16x128xf32>
    %c0_3 = arith.constant 0 : index
    %c0_4 = arith.constant 0 : index
    %4 = vector.load %arg3[%c0_3, %c0_4] : memref<1x128xf32, #tpu.memory_space<vmem>>, vector<1x128xf32>
    %5 = vector.broadcast %4 : vector<1x128xf32> to vector<16x128xf32>
    %6 = arith.addf %3, %5 : vector<16x128xf32>
    %c0_5 = arith.constant 0 : index
    %c0_6 = arith.constant 0 : index
    %7 = vector.load %arg4[%c0_5, %c0_6] : memref<16x128xf32, #tpu.memory_space<vmem>>, vector<16x128xf32>
    tpu.vector_store %arg4[%c0_5, %c0_6], %6 {strides = array<i32>} : memref<16x128xf32, #tpu.memory_space<vmem>>, vector<16x128xf32>,
    return
  }
  func.func @transform_0(%arg0: i32) -> (i32, i32) {
    %c0_i32 = arith.constant 0 : i32
    %c0_i32_0 = arith.constant 0 : i32
    return %arg0, %c0_i32 : i32, i32
  }
  func.func @transform_1(%arg0: i32) -> (i32, i32) {
    %c0_i32 = arith.constant 0 : i32
    %c0_i32_0 = arith.constant 0 : i32
    %c0_i32_1 = arith.constant 0 : i32
    return %c0_i32, %c0_i32_0 : i32, i32
  }
  func.func @transform_2(%arg0: i32) -> (i32, i32) {
    %c0_i32 = arith.constant 0 : i32
    %c0_i32_0 = arith.constant 0 : i32
    %c0_i32_1 = arith.constant 0 : i32
    return %c0_i32, %c0_i32_0 : i32, i32
  }
  func.func @transform_3(%arg0: i32) -> (i32, i32) {
    %c0_i32 = arith.constant 0 : i32
    %c0_i32_0 = arith.constant 0 : i32
    return %arg0, %c0_i32 : i32, i32
  }
}

</mosaic_0001>

<llo_original>
// kernel: tpu_custom_call.1
$region0: #{tpu_custom_call.1}
  #allocation0 [shape = 'u32[]', space=smem, size = 0x4, offset = 0x4, fixed_abs, tag = 'smem constant byte address 0x4 - core index']
  #allocation1 [shape = 'u32[144,128]{1,0:T(1,128)}', space=vmem, size = 0x12000, scoped, tag = 'internal scratch']
  %s0 = inlined_call_operand.hbm [shape: f32[32,256], index: 0, kind: input, shape index: {}]
  %s1 = inlined_call_operand.hbm [shape: bf16[256,128], index: 1, kind: input, shape index: {}]
  %s2 = inlined_call_operand.vmem [shape: f32[1,128], index: 2, kind: input, shape index: {}]
  %s3 = inlined_call_operand.hbm [shape: f32[32,128], index: 3, kind: output, shape index: {}]
  %s4 = sld [smem:[#allocation0]]
  $region53: #{tpu_custom_call.1} parent=0
    _
  %s6 = ssub.s32 1, %s4
  %s7 = scalar_select 0, %s6, %s4
  $region1: #{tpu_custom_call.1} parent=0
    #allocation2 [shape = 'u8[32768]{0}', space=vmem, size = 0x8000, scoped, tag = 'input window, operand 0']
    #allocation3 [shape = 's32[2]{0}', space=sflag, size = 0x8, scoped, tag = 'scoped memory for tpu_custom_call.1']
    #allocation4 [shape = 's32[2]{0}', space=sflag, size = 0x8, scoped, tag = 'scoped memory for tpu_custom_call.1']
    #allocation5 [shape = 'u8[65536]{0}', space=vmem, size = 0x10000, scoped, tag = 'input window, operand 1, single buffered']
    #allocation6 [shape = 's32[1]{0}', space=sflag, size = 0x4, scoped, tag = 'scoped memory for tpu_custom_call.1']
    #allocation7 [shape = 'u8[16384]{0}', space=vmem, size = 0x4000, scoped, tag = 'output window, operand 0']
    %8 = vsyncpa [#allocation3], 0
    %s9 = scalar_lea.sflag [#allocation3], 1
    %10 = vsyncpa %s9, 0
    %11 = vsyncpa [#allocation6], 0
    %12 = vsyncpa [#allocation4], 0
    %s13 = scalar_lea.sflag [#allocation4], 1
    %14 = vsyncpa %s13, 0
    loop: start=0, step=1, limit=4
    $region2: #{tpu_custom_call.1} parent=1 // loop_pre_header
      _
    $region3: #{tpu_custom_call.1} parent=1 // loop_header
      %s16 = sphi 0, %s20
      %p17 = scmp.ge.s32.totalorder %s16, 4
      %s26 = sphi 0, %s28
      %s29 = sphi 0, %s26
      %s30 = sphi 0, %s29
      %s46 = sphi 0, %s30
      %s50 = sphi 0, %s50
      %s52 = sphi 0, %s50
      %s53 = sphi 0, %s52
      %s67 = sphi 0, %s53
      %s71 = sphi 0, %s71
      %s73 = sphi 0, %s71
      %s74 = sphi 0, %s73
      %s88 = sphi 0, %s74
      %s94 = sphi 0, %s96
      %s97 = sphi 0, %s94
      %s98 = sphi 0, %s97
      %s114 = sphi 0, %s98
    $region4: #{tpu_custom_call.1} parent=1 // loop_header_branch
      %19 = sbr.rel (%p17) target = $region8
    $region5: #{tpu_custom_call.1} parent=1 // loop_body
      %s21 = ssub.s32 %s16, 1
      %s22 = ssub.s32 %s16, 2
      %s23 = sadd.s32 %s16, 1
      %s24 = ssub.s32 %s16, %s23
      %p25 = scmp.eq.s32.totalorder %s24, 0
      %s27 = sadd.s32 %s26, 1
      %s28 = scalar_select %p25, %s26, %s27
      %p31 = pneg %p25
      %p32 = scmp.eq.s32.totalorder %s16, 1
      %p33 = por %p31, %p32
      %p34 = scmp.ne.s32.totalorder %s26, %s29
      %p35 = scmp.eq.s32.totalorder %s16, 0
      %p36 = por %p34, %p35
      %p37 = scmp.ne.s32.totalorder %s26, %s29
      %p38 = scmp.eq.s32.totalorder %s21, 1
      %p39 = por %p37, %p38
      %p40 = scmp.ne.s32.totalorder %s29, %s30
      %p41 = scmp.eq.s32.totalorder %s21, 0
      %p42 = por %p40, %p41
      %p43 = scmp.ne.s32.totalorder %s29, %s30
      %p44 = scmp.eq.s32.totalorder %s22, 1
      %p45 = por %p43, %p44
      %p47 = scmp.ne.s32.totalorder %s30, %s46
      %p48 = scmp.eq.s32.totalorder %s22, 0
      %p49 = por %p47, %p48
      %s51 = sadd.s32 %s50, 1
      %p54 = scmp.eq.s32.totalorder %s16, 1
      %p55 = scmp.ne.s32.totalorder %s50, %s52
      %p56 = scmp.eq.s32.totalorder %s16, 0
      %p57 = por %p55, %p56
      %p58 = scmp.ne.s32.totalorder %s50, %s52
      %p59 = scmp.eq.s32.totalorder %s21, 1
      %p60 = por %p58, %p59
      %p61 = scmp.ne.s32.totalorder %s52, %s53
      %p62 = scmp.eq.s32.totalorder %s21, 0
      %p63 = por %p61, %p62
      %p64 = scmp.ne.s32.totalorder %s52, %s53
      %p65 = scmp.eq.s32.totalorder %s22, 1
      %p66 = por %p64, %p65
      %p68 = scmp.ne.s32.totalorder %s53, %s67
      %p69 = scmp.eq.s32.totalorder %s22, 0
      %p70 = por %p68, %p69
      %s72 = sadd.s32 %s71, 1
      %p75 = scmp.eq.s32.totalorder %s16, 1
      %p76 = scmp.ne.s32.totalorder %s71, %s73
      %p77 = scmp.eq.s32.totalorder %s16, 0
      %p78 = por %p76, %p77
      %p79 = scmp.ne.s32.totalorder %s71, %s73
      %p80 = scmp.eq.s32.totalorder %s21, 1
      %p81 = por %p79, %p80
      %p82 = scmp.ne.s32.totalorder %s73, %s74
      %p83 = scmp.eq.s32.totalorder %s21, 0
      %p84 = por %p82, %p83
      %p85 = scmp.ne.s32.totalorder %s73, %s74
      %p86 = scmp.eq.s32.totalorder %s22, 1
      %p87 = por %p85, %p86
      %p89 = scmp.ne.s32.totalorder %s74, %s88
      %p90 = scmp.eq.s32.totalorder %s22, 0
      %p91 = por %p89, %p90
      %s92 = ssub.s32 %s16, %s23
      %p93 = scmp.eq.s32.totalorder %s92, 0
      %s95 = sadd.s32 %s94, 1
      %s96 = scalar_select %p93, %s94, %s95
      %p99 = pneg %p93
      %p100 = scmp.eq.s32.totalorder %s16, 1
      %p101 = por %p99, %p100
      %p102 = scmp.ne.s32.totalorder %s94, %s97
      %p103 = scmp.eq.s32.totalorder %s16, 0
      %p104 = por %p102, %p103
      %p105 = scmp.ne.s32.totalorder %s94, %s97
      %p106 = scmp.eq.s32.totalorder %s21, 1
      %p107 = por %p105, %p106
      %p108 = scmp.ne.s32.totalorder %s97, %s98
      %p109 = scmp.eq.s32.totalorder %s21, 0
      %p110 = por %p108, %p109
      %p111 = scmp.ne.s32.totalorder %s97, %s98
      %p112 = scmp.eq.s32.totalorder %s22, 1
      %p113 = por %p111, %p112
      %p115 = scmp.ne.s32.totalorder %s98, %s114
      %p116 = scmp.eq.s32.totalorder %s22, 0
      %p117 = por %p115, %p116
      %p118 = scmp.le.s32.totalorder 1, %s16
      %p119 = scmp.lt.s32.totalorder %s16, 3
      %p120 = pnand %p118, %p119
      %p121 = pneg %p120
      // Predicated region
      $region9: #{tpu_custom_call.1} parent=5 // pred_check
        _
      $region10: #{tpu_custom_call.1} parent=5 // pred_check_branch
        %123 = sbr.rel (%p120) target = $region12
      $region11: #{tpu_custom_call.1} parent=5 // pred_region
        %s124 = ssub.s32 %s16, 1
        // Predicated region
        $region13: #{tpu_custom_call.1} parent=11 // pred_check
          %p125 = pneg %p63
        $region14: #{tpu_custom_call.1} parent=11 // pred_check_branch
          %127 = sbr.rel (%p125) target = $region16
        $region15: #{tpu_custom_call.1} parent=11 // pred_region
          %s129 = ssub.s32 2048, 2048
          %130 = vsyncadd [#allocation6], %s129
          %s131 = sshll.u32 [#allocation5], 4
          %s132 = int_to_ptr.vmem [resolvable:$true] %s131
          %137 = dma.hbm_to_vmem [thread:$0]  %s1, 2048, %s132, [#allocation6], 64, 64, 4
        $region16: #{tpu_custom_call.1} parent=11 // pred_fallthru
          _
        // Predicated region
        $region17: #{tpu_custom_call.1} parent=11 // pred_check
          %p138 = pneg %p84
        $region18: #{tpu_custom_call.1} parent=11 // pred_check_branch
          %140 = sbr.rel (%p138) target = $region20
        $region19: #{tpu_custom_call.1} parent=11 // pred_region
          _
        $region20: #{tpu_custom_call.1} parent=11 // pred_fallthru
          _
      $region12: #{tpu_custom_call.1} parent=5 // pred_fallthru
        _
      %p141 = scmp.lt.s32.totalorder %s16, 2
      // Predicated region
      $region21: #{tpu_custom_call.1} parent=5 // pred_check
        %p142 = pneg %p141
      $region22: #{tpu_custom_call.1} parent=5 // pred_check_branch
        %144 = sbr.rel (%p142) target = $region24
      $region23: #{tpu_custom_call.1} parent=5 // pred_region
        // Predicated region
        $region25: #{tpu_custom_call.1} parent=23 // pred_check
          %p145 = pneg %p36
        $region26: #{tpu_custom_call.1} parent=23 // pred_check_branch
          %147 = sbr.rel (%p145) target = $region28
        $region27: #{tpu_custom_call.1} parent=23 // pred_region
          %s148 = sand.u32 %s26, 1
          %s149 = scalar_lea.sflag [#allocation3], %s148
          %s150 = sand.u32 %s26, 1
          %s151 = smul.addr %s150, 32
          %s152 = scalar_lea.vmem [#allocation2], %s151
          %s153 = smul.u32 2, %s16
          %s155 = ssub.s32 512, 512
          %156 = vsyncadd %s149, %s155
          %s157 = smul.addr %s153, 2
          %s158 = smul.addr %s157, 128
          %s159 = scalar_lea.hbm %s0, %s158
          %s160 = sshll.u32 %s152, 4
          %s161 = int_to_ptr.vmem [resolvable:$true] %s160
          %166 = dma.hbm_to_vmem [thread:$0]  %s159, 512, %s161, %s149, 256, 256, 16
        $region28: #{tpu_custom_call.1} parent=23 // pred_fallthru
          _
      $region24: #{tpu_custom_call.1} parent=5 // pred_fallthru
        _
      %p167 = scmp.le.s32.totalorder 1, %s16
      %p168 = scmp.lt.s32.totalorder %s16, 3
      %p169 = pnand %p167, %p168
      %p170 = pneg %p169
      // Predicated region
      $region29: #{tpu_custom_call.1} parent=5 // pred_check
        _
      $region30: #{tpu_custom_call.1} parent=5 // pred_check_branch
        %172 = sbr.rel (%p169) target = $region32
      $region31: #{tpu_custom_call.1} parent=5 // pred_region
        %s173 = ssub.s32 %s16, 1
        %s174 = sand.u32 %s29, 1
        %s175 = scalar_lea.sflag [#allocation3], %s174
        %s176 = sand.u32 %s29, 1
        %s177 = smul.addr %s176, 32
        %s178 = scalar_lea.vmem [#allocation2], %s177
        // Predicated region
        $region33: #{tpu_custom_call.1} parent=31 // pred_check
          %p179 = pneg %p42
        $region34: #{tpu_custom_call.1} parent=31 // pred_check_branch
          %181 = sbr.rel (%p179) target = $region36
        $region35: #{tpu_custom_call.1} parent=31 // pred_region
          %182 = dma.done %s175, 512
        $region36: #{tpu_custom_call.1} parent=31 // pred_fallthru
          _
        // Predicated region
        $region37: #{tpu_custom_call.1} parent=31 // pred_check
          %p183 = pneg %p63
        $region38: #{tpu_custom_call.1} parent=31 // pred_check_branch
          %185 = sbr.rel (%p183) target = $region40
        $region39: #{tpu_custom_call.1} parent=31 // pred_region
          %186 = dma.done [#allocation6], 2048
        $region40: #{tpu_custom_call.1} parent=31 // pred_fallthru
          _
        %s187 = sand.u32 %s29, 1
        %s188 = scalar_lea.sflag [#allocation3], %s187
        %s189 = sand.u32 %s29, 1
        %s190 = smul.addr %s189, 32
        %s191 = scalar_lea.vmem [#allocation2], %s190
        %p192 = pneg %p42
        %p193 = pneg %p39
        %p194 = pneg %p63
        %p195 = pneg %p60
        %p196 = pneg %p84
        %p197 = pneg %p81
        %p198 = pneg %p110
        %p199 = pneg %p107
        %s200 = sand.u32 %s97, 1
        %s201 = scalar_lea.sflag [#allocation4], %s200
        %s202 = sand.u32 %s97, 1
        %s203 = smul.addr %s202, 16
        %s204 = scalar_lea.vmem [#allocation7], %s203
        %s205 = smul.u32 2, %s21
        %s206 = smul.u32 2, %s21
        %v208 = vld [vmem:[%s178] sm:$0xff]
        %v209 = vld [vmem:[%s178 + $0x8] sm:$0xff]
        %v210 = vld [vmem:[%s178 + $0x10] sm:$0xff]
        %v211 = vld [vmem:[%s178 + $0x18] sm:$0xff]
        %v212 = vpack.c.bf16 %v210, %v208
        %v213 = vpack.c.bf16 %v211, %v209
        %v214 = vld [vmem:[#allocation5] sm:$0xf]
        %v215 = vld [vmem:[#allocation5 + $0x4] sm:$0xf]
        %v216 = vld [vmem:[#allocation5 + $0x8] sm:$0xf]
        %v217 = vld [vmem:[#allocation5 + $0xc] sm:$0xf]
        %v218 = vld [vmem:[#allocation5 + $0x10] sm:$0xf]
        %v219 = vld [vmem:[#allocation5 + $0x14] sm:$0xf]
        %v220 = vld [vmem:[#allocation5 + $0x18] sm:$0xf]
        %v221 = vld [vmem:[#allocation5 + $0x1c] sm:$0xf]
        %v222 = vld [vmem:[#allocation5 + $0x20] sm:$0xf]
        %v223 = vld [vmem:[#allocation5 + $0x24] sm:$0xf]
        %v224 = vld [vmem:[#allocation5 + $0x28] sm:$0xf]
        %v225 = vld [vmem:[#allocation5 + $0x2c] sm:$0xf]
        %v226 = vld [vmem:[#allocation5 + $0x30] sm:$0xf]
        %v227 = vld [vmem:[#allocation5 + $0x34] sm:$0xf]
        %v228 = vld [vmem:[#allocation5 + $0x38] sm:$0xf]
        %v229 = vld [vmem:[#allocation5 + $0x3c] sm:$0xf]
        %v230 = vld [vmem:[#allocation5 + $0x40] sm:$0xf]
        %v231 = vld [vmem:[#allocation5 + $0x44] sm:$0xf]
        %v232 = vld [vmem:[#allocation5 + $0x48] sm:$0xf]
        %v233 = vld [vmem:[#allocation5 + $0x4c] sm:$0xf]
        %v234 = vld [vmem:[#allocation5 + $0x50] sm:$0xf]
        %v235 = vld [vmem:[#allocation5 + $0x54] sm:$0xf]
        %v236 = vld [vmem:[#allocation5 + $0x58] sm:$0xf]
        %v237 = vld [vmem:[#allocation5 + $0x5c] sm:$0xf]
        %v238 = vld [vmem:[#allocation5 + $0x60] sm:$0xf]
        %v239 = vld [vmem:[#allocation5 + $0x64] sm:$0xf]
        %v240 = vld [vmem:[#allocation5 + $0x68] sm:$0xf]
        %v241 = vld [vmem:[#allocation5 + $0x6c] sm:$0xf]
        %v242 = vld [vmem:[#allocation5 + $0x70] sm:$0xf]
        %v243 = vld [vmem:[#allocation5 + $0x74] sm:$0xf]
        %v244 = vld [vmem:[#allocation5 + $0x78] sm:$0xf]
        %v245 = vld [vmem:[#allocation5 + $0x7c] sm:$0xf]
        %v246 = vld [vmem:[%s2] sm:$0x1]
        %v248 = vlaneseq
        %v249 = vshrl.u32 %v248, 7
        %v250 = vsub.s32 0, %v249
        %v251 = vrot.slane %v246, %v250
        %v285 = vunpack.c.l.b16 %v214
        %v286 = vunpack.c.l.b16 %v215
        %v287 = vunpack.c.l.b16 %v216
        %v288 = vunpack.c.l.b16 %v217
        %v289 = vunpack.c.l.b16 %v218
        %v290 = vunpack.c.l.b16 %v219
        %v291 = vunpack.c.l.b16 %v220
        %v292 = vunpack.c.l.b16 %v221
        %v293 = vunpack.c.l.b16 %v222
        %v294 = vunpack.c.l.b16 %v223
        %v295 = vunpack.c.l.b16 %v224
        %v296 = vunpack.c.l.b16 %v225
        %v297 = vunpack.c.l.b16 %v226
        %v298 = vunpack.c.l.b16 %v227
        %v299 = vunpack.c.l.b16 %v228
        %v300 = vunpack.c.l.b16 %v229
        %v301 = vunpack.c.l.b16 %v230
        %v302 = vunpack.c.l.b16 %v231
        %v303 = vunpack.c.l.b16 %v232
        %v304 = vunpack.c.l.b16 %v233
        %v305 = vunpack.c.l.b16 %v234
        %v306 = vunpack.c.l.b16 %v235
        %v307 = vunpack.c.l.b16 %v236
        %v308 = vunpack.c.l.b16 %v237
        %v309 = vunpack.c.l.b16 %v238
        %v310 = vunpack.c.l.b16 %v239
        %v311 = vunpack.c.l.b16 %v240
        %v312 = vunpack.c.l.b16 %v241
        %v313 = vunpack.c.l.b16 %v242
        %v314 = vunpack.c.l.b16 %v243
        %v315 = vunpack.c.l.b16 %v244
        %v316 = vunpack.c.l.b16 %v245
        %v317 = vpack.c.b16 %v286, %v285
        %v318 = vpack.c.b16 %v288, %v287
        %v319 = vpack.c.b16 %v290, %v289
        %v320 = vpack.c.b16 %v292, %v291
        %v321 = vpack.c.b16 %v294, %v293
        %v322 = vpack.c.b16 %v296, %v295
        %v323 = vpack.c.b16 %v298, %v297
        %v324 = vpack.c.b16 %v300, %v299
        %v325 = vpack.c.b16 %v302, %v301
        %v326 = vpack.c.b16 %v304, %v303
        %v327 = vpack.c.b16 %v306, %v305
        %v328 = vpack.c.b16 %v308, %v307
        %v329 = vpack.c.b16 %v310, %v309
        %v330 = vpack.c.b16 %v312, %v311
        %v331 = vpack.c.b16 %v314, %v313
        %v332 = vpack.c.b16 %v316, %v315
        %349 = vmatprep.subr.bf16.mxu0 0
        %350 = vmatpush1.bf16.msra.mxu0 %v324
        %351 = vmatprep.subr.bf16.mxu0 0
        %352 = vmatpush1.bf16.msra.mxu0 %v323
        %353 = vmatprep.subr.bf16.mxu0 0
        %354 = vmatpush1.bf16.msra.mxu0 %v322
        %355 = vmatprep.subr.bf16.mxu0 0
        %356 = vmatpush1.bf16.msra.mxu0 %v321
        %357 = vmatprep.subr.bf16.mxu0 0
        %358 = vmatpush1.bf16.msra.mxu0 %v320
        %359 = vmatprep.subr.bf16.mxu0 0
        %360 = vmatpush1.bf16.msra.mxu0 %v319
        %361 = vmatprep.subr.bf16.mxu0 0
        %362 = vmatpush1.bf16.msra.mxu0 %v318
        %363 = vmatprep.subr.bf16.mxu0 0
        %364 = vmatpush1.bf16.msra.mxu0 %v317
        %365 = vmatprep.subr.bf16.mxu0 0
        %366 = vmatpush2.bf16.msra.mxu0 %v332
        %367 = vmatprep.subr.bf16.mxu0 0
        %368 = vmatpush2.bf16.msra.mxu0 %v331
        %369 = vmatprep.subr.bf16.mxu0 0
        %370 = vmatpush2.bf16.msra.mxu0 %v330
        %371 = vmatprep.subr.bf16.mxu0 0
        %372 = vmatpush2.bf16.msra.mxu0 %v329
        %373 = vmatprep.subr.bf16.mxu0 0
        %374 = vmatpush2.bf16.msra.mxu0 %v328
        %375 = vmatprep.subr.bf16.mxu0 0
        %376 = vmatpush2.bf16.msra.mxu0 %v327
        %377 = vmatprep.subr.bf16.mxu0 0
        %378 = vmatpush2.bf16.msra.mxu0 %v326
        %379 = vmatprep.subr.bf16.mxu0 0
        %380 = vmatpush2.bf16.msra.mxu0 %v325
        %381 = vmatprep.mubr.bf16.mxu0 %v213
        %382 = vmatmul.mubr.bf16.gmra.mxu0 %v212
        %v383 = vpop.f32.mrf.mxu0
        %v384 = vadd.f32 %v251, %v383
        %v385 = vpop.f32.mrf.mxu0
        %v386 = vpop.f32.mrf.mxu0
        %v387 = vadd.f32 %v251, %v386
        %v388 = vpop.f32.mrf.mxu0
        %389 = vdwg.mxu0
        %390 = vst [vmem:[%s204] sm:$0xff] %v384
        %391 = vst [vmem:[%s204 + $0x8] sm:$0xff] %v387
        %s392 = sand.u32 %s97, 1
        %s393 = scalar_lea.sflag [#allocation4], %s392
        %s394 = sand.u32 %s97, 1
        %s395 = smul.addr %s394, 16
        %s396 = scalar_lea.vmem [#allocation7], %s395
        // Predicated region
        $region41: #{tpu_custom_call.1} parent=31 // pred_check
          %p397 = pneg %p107
        $region42: #{tpu_custom_call.1} parent=31 // pred_check_branch
          %399 = sbr.rel (%p397) target = $region44
        $region43: #{tpu_custom_call.1} parent=31 // pred_region
          %s400 = smul.u32 2, %s21
          %s402 = ssub.s32 256, 256
          %403 = vsyncadd %s393, %s402
          %s404 = smul.addr %s400, 128
          %s405 = scalar_lea.hbm %s3, %s404
          %s406 = sshll.u32 %s396, 4
          %s407 = int_to_ptr.vmem [resolvable:$true] %s406
          %412 = dma.vmem_to_hbm [thread:$0]  %s407, 256, %s405, %s393, 128, 128, 8
        $region44: #{tpu_custom_call.1} parent=31 // pred_fallthru
          _
      $region32: #{tpu_custom_call.1} parent=5 // pred_fallthru
        _
      %p413 = scmp.le.s32.totalorder 2, %s16
      // Predicated region
      $region45: #{tpu_custom_call.1} parent=5 // pred_check
        %p414 = pneg %p413
      $region46: #{tpu_custom_call.1} parent=5 // pred_check_branch
        %416 = sbr.rel (%p414) target = $region48
      $region47: #{tpu_custom_call.1} parent=5 // pred_region
        %s417 = ssub.s32 %s16, 2
        // Predicated region
        $region49: #{tpu_custom_call.1} parent=47 // pred_check
          %p418 = pneg %p113
        $region50: #{tpu_custom_call.1} parent=47 // pred_check_branch
          %420 = sbr.rel (%p418) target = $region52
        $region51: #{tpu_custom_call.1} parent=47 // pred_region
          %s421 = sand.u32 %s98, 1
          %s422 = scalar_lea.sflag [#allocation4], %s421
          %s423 = sand.u32 %s98, 1
          %s424 = smul.addr %s423, 16
          %s425 = scalar_lea.vmem [#allocation7], %s424
          %426 = dma.done %s422, 256
        $region52: #{tpu_custom_call.1} parent=47 // pred_fallthru
          _
      $region48: #{tpu_custom_call.1} parent=5 // pred_fallthru
        _
    $region6: #{tpu_custom_call.1} parent=1 // loop_footer
      %s20 = sadd.s32 1, %s16
    $region7: #{tpu_custom_call.1} parent=1 // loop_footer_branch
      %15 = sbr.rel target = $region3
    $region8: #{tpu_custom_call.1} parent=1 // loop_exit
      _
    %427 = vsyncpa [#allocation3], 1
    %s428 = scalar_lea.sflag [#allocation3], 1
    %429 = vsyncpa %s428, 1
    %430 = vsyncpa [#allocation6], 1
    %431 = vsyncpa [#allocation4], 1
    %s432 = scalar_lea.sflag [#allocation4], 1
    %433 = vsyncpa %s432, 1

</llo_original>
